<compile_context>
chip_gen: v5e
topology: v5e:2x2
jax: 0.10.0
libtpu: 0.0.40
codegen_flags: <defaults>
</compile_context>

<pallas_src>
import jax
import jax.numpy as jnp
import numpy as np
from jax.experimental import pallas as pl
from jax.experimental.pallas import tpu as pltpu


def _round_up(x, m):
    return ((x + m - 1) // m) * m


def _pick_tile(total, target, quantum):
    """Largest multiple of `quantum` that divides `total` and is <= target.
    Falls back to the full extent (always a legal BlockSpec dim)."""
    target = max(quantum, min(target, total))
    t = (target // quantum) * quantum
    while t >= quantum:
        if total % t == 0:
            return t
        t -= quantum
    return total


def _fused_kernel(x_ref, w_ref, b_ref, adj_ref, o_ref):
    # x_ref  : [N, tm, D]  VMEM, input dtype
    # w_ref  : [D, E]      VMEM, f32 (W^T, resident across the grid)
    # b_ref  : [1, E]      VMEM, f32 (resident across the grid)
    # adj_ref: [N, N]      SMEM, f32
    # o_ref  : [N, tm, E]  VMEM, output dtype
    n_agents, tm, d = x_ref.shape
    w = w_ref[...]
    bias = b_ref[...]                                    # [1, E], broadcasts

    # Shared per-agent linear, bias deferred until after the mix.
    if tm % 8 == 0:
        # [N, tm, D] -> [N*tm, D] is a free (sublane-aligned) shape cast:
        # one large-M MXU matmul amortizes fill/drain.
        y = jnp.dot(x_ref[...].reshape(n_agents * tm, d), w,
                    preferred_element_type=jnp.float32)           # [N*tm, E] f32
        ys = [y[j * tm:(j + 1) * tm, :] for j in range(n_agents)]
    else:
        ys = [jnp.dot(x_ref[j], w, preferred_element_type=jnp.float32)
              for j in range(n_agents)]

    # Agent mix on the VPU: N*N scalar-broadcast FMAs in f32; bias added once
    # per output element AFTER the mix, so
    #   adj @ (X @ W^T) + b == (adj @ X) @ W^T + b    holds for any adj.
    for i in range(n_agents):
        acc = adj_ref[i, 0] * ys[0]
        for j in range(1, n_agents):
            acc = acc + adj_ref[i, j] * ys[j]
        o_ref[i, :, :] = (acc + bias).astype(o_ref.dtype)


def agent_graph_conv(H_list, adj, weight, bias):
    """H_list: list of N arrays [B, C, D]; adj: [N, N]; weight: [E, D];
    bias: [E].  Returns [N, B, C, E] (the module requires E == D)."""
    H = jnp.stack(H_list, axis=0)                        # [N, B, C, D]
    N, B, C, D = H.shape
    E = weight.shape[0]
    M = B * C
    out_dtype = H.dtype

    x = H.reshape(N, M, D)                               # free row-major view
    w_t = weight.T.astype(jnp.float32)                   # [D, E], tiny
    b_2d = bias.astype(jnp.float32).reshape(1, E)        # [1, E]
    adj_f32 = adj.astype(jnp.float32)                    # [N, N] -> SMEM

    # ---- Tile the M axis from an explicit VMEM budget --------------------
    # Per m-row VMEM cost (lane dims pad to 128): double-buffered input and
    # output streams plus in-kernel f32 temporaries (Y, accumulator).
    pad_d = _round_up(D, 128)
    pad_e = _round_up(E, 128)
    per_m_bytes = 4 * N * (3 * pad_d + 4 * pad_e)
    vmem_budget = 24 * 1024 * 1024        # headroom under v7x's 32 MiB scoped VMEM
    tm_cap = max(8, vmem_budget // per_m_bytes)
    # >= 2 grid steps when M allows, so v7x's two TensorCores both get a share
    # of the single "parallel" axis; otherwise take the full extent.
    tm_target = min(tm_cap, M // 2) if M >= 16 else M
    tm = _pick_tile(M, tm_target, 8)
    grid = (M // tm,)

    out = pl.pallas_call(
        _fused_kernel,
        out_shape=jax.ShapeDtypeStruct((N, M, E), out_dtype),
        grid=grid,
        in_specs=[
            pl.BlockSpec((N, tm, D), lambda i: (0, i, 0)),        # H block
            pl.BlockSpec((D, E), lambda i: (0, 0)),               # W^T resident
            pl.BlockSpec((1, E), lambda i: (0, 0)),               # bias resident
            pl.BlockSpec(memory_space=pltpu.MemorySpace.SMEM),    # adj (f32)
        ],
        out_specs=pl.BlockSpec((N, tm, E), lambda i: (0, i, 0)),
        compiler_params=pltpu.CompilerParams(
            dimension_semantics=("parallel",),
            vmem_limit_bytes=32 * 1024 * 1024),
    )(x, w_t, b_2d, adj_f32)

    return out.reshape(N, B, C, E)


def _reference(H_list, adj, weight, bias):
    H = jnp.stack(H_list, axis=0)                                 # [N, B, C, D]
    H_mix = jnp.einsum('ij,jbcd->ibcd', adj, H,
                       precision=jax.lax.Precision.HIGHEST)
    out = jnp.einsum('ibcd,ed->ibce', H_mix, weight,
                     precision=jax.lax.Precision.HIGHEST) + bias
    return out


if __name__ == "__main__":
    # Small shapes consistent with the module: N agents, each [B, C, D].
    # The module's trailing `.view(N, B, C, D)` forces out_dim == in_dim.
    N, B, C, D = 4, 2, 8, 32
    E = D
    key = jax.random.PRNGKey(0)
    k_h, k_w, k_b, k_a = jax.random.split(key, 4)

    # Agent embeddings (the module receives a list and stacks it).
    H_all = jax.random.normal(k_h, (N, B, C, D), dtype=jnp.float32)
    H_list = [H_all[i] for i in range(N)]

    # nn.Linear(in_dim=D, out_dim=E) parameters.
    bound = 1.0 / np.sqrt(D)
    weight = jax.random.uniform(k_w, (E, D), minval=-bound, maxval=bound,
                                dtype=jnp.float32)
    bias = jax.random.uniform(k_b, (E,), minval=-bound, maxval=bound,
                              dtype=jnp.float32)

    # Deterministic row-normalized adjacency.
    adj_raw = jax.random.uniform(k_a, (N, N), dtype=jnp.float32)
    adj = adj_raw / jnp.sum(adj_raw, axis=1, keepdims=True)

    fn = jax.jit(agent_graph_conv)
    out = jax.block_until_ready(fn(H_list, adj, weight, bias))

    ref = jax.block_until_ready(_reference(H_list, adj, weight, bias))
    assert out.shape == (N, B, C, E), out.shape
    # f32 end to end now (no bf16 intermediates); the tolerance only covers
    # the MXU's default-precision f32 passes vs. the HIGHEST-precision
    # XLA reference.
    np.testing.assert_allclose(np.asarray(out), np.asarray(ref),
                               rtol=1e-2, atol=1e-2)
    print("KERNEL_OK")
</pallas_src>

<mosaic_0001>
module attributes {stable_mosaic.version = 11 : i64} {
  func.func @_fused_kernel(%arg0: i32, %arg1: memref<4x8x32xf32, #tpu.memory_space<vmem>>, %arg2: memref<32x32xf32, #tpu.memory_space<vmem>>, %arg3: memref<1x32xf32, #tpu.memory_space<vmem>>, %arg4: memref<4x4xf32, #tpu.memory_space<smem>>, %arg5: memref<4x8x32xf32, #tpu.memory_space<vmem>>) attributes {dimension_semantics = [#tpu.dimension_semantics<parallel>], iteration_bounds = array<i64: 2>, scalar_prefetch = 0 : i64, scratch_operands = 0 : i64, tpu.core_type = #tpu.core_type<tc>, window_params = [{transform_indices = @transform_0, window_bounds = array<i64: 4, 8, 32>}, {pipeline_mode = #tpu.pipeline_mode<synchronous>, transform_indices = @transform_1, window_bounds = array<i64: 32, 32>}, {pipeline_mode = #tpu.pipeline_mode<synchronous>, transform_indices = @transform_2, window_bounds = array<i64: 1, 32>}, {transform_indices = @transform_3, window_bounds = array<i64: 4, 4>}, {transform_indices = @transform_4, window_bounds = array<i64: 4, 8, 32>}]} {
    %c0 = arith.constant 0 : index
    %c0_0 = arith.constant 0 : index
    %0 = vector.load %arg2[%c0, %c0_0] : memref<32x32xf32, #tpu.memory_space<vmem>>, vector<32x32xf32>
    %c0_1 = arith.constant 0 : index
    %c0_2 = arith.constant 0 : index
    %1 = vector.load %arg3[%c0_1, %c0_2] : memref<1x32xf32, #tpu.memory_space<vmem>>, vector<1x32xf32>
    %c0_3 = arith.constant 0 : index
    %c0_4 = arith.constant 0 : index
    %c0_5 = arith.constant 0 : index
    %2 = vector.load %arg1[%c0_3, %c0_4, %c0_5] : memref<4x8x32xf32, #tpu.memory_space<vmem>>, vector<4x8x32xf32>
    %3 = vector.shape_cast %2 : vector<4x8x32xf32> to vector<32x32xf32>
    %cst = arith.constant dense<0.000000e+00> : vector<32x32xf32>
    %4 = tpu.matmul %3, %0, %cst {dimension_numbers = #tpu.dot_dimension_numbers<[1], [0], [0], [1], [0, 0, 1, 1], [], []>} : vector<32x32xf32>, vector<32x32xf32>, vector<32x32xf32> -> vector<32x32xf32>
    %5 = vector.extract_strided_slice %4 {offsets = [0, 0], sizes = [8, 32], strides = [1, 1]} : vector<32x32xf32> to vector<8x32xf32>
    %6 = vector.extract_strided_slice %4 {offsets = [8, 0], sizes = [8, 32], strides = [1, 1]} : vector<32x32xf32> to vector<8x32xf32>
    %7 = vector.extract_strided_slice %4 {offsets = [16, 0], sizes = [8, 32], strides = [1, 1]} : vector<32x32xf32> to vector<8x32xf32>
    %8 = vector.extract_strided_slice %4 {offsets = [24, 0], sizes = [8, 32], strides = [1, 1]} : vector<32x32xf32> to vector<8x32xf32>
    %c0_6 = arith.constant 0 : index
    %c0_7 = arith.constant 0 : index
    %9 = memref.load %arg4[%c0_6, %c0_7] : memref<4x4xf32, #tpu.memory_space<smem>>
    %10 = vector.broadcast %9 : f32 to vector<8x32xf32>
    %11 = arith.mulf %10, %5 : vector<8x32xf32>
    %c0_8 = arith.constant 0 : index
    %c1 = arith.constant 1 : index
    %12 = memref.load %arg4[%c0_8, %c1] : memref<4x4xf32, #tpu.memory_space<smem>>
    %13 = vector.broadcast %12 : f32 to vector<8x32xf32>
    %14 = arith.mulf %13, %6 : vector<8x32xf32>
    %15 = arith.addf %11, %14 : vector<8x32xf32>
    %c0_9 = arith.constant 0 : index
    %c2 = arith.constant 2 : index
    %16 = memref.load %arg4[%c0_9, %c2] : memref<4x4xf32, #tpu.memory_space<smem>>
    %17 = vector.broadcast %16 : f32 to vector<8x32xf32>
    %18 = arith.mulf %17, %7 : vector<8x32xf32>
    %19 = arith.addf %15, %18 : vector<8x32xf32>
    %c0_10 = arith.constant 0 : index
    %c3 = arith.constant 3 : index
    %20 = memref.load %arg4[%c0_10, %c3] : memref<4x4xf32, #tpu.memory_space<smem>>
    %21 = vector.broadcast %20 : f32 to vector<8x32xf32>
    %22 = arith.mulf %21, %8 : vector<8x32xf32>
    %23 = arith.addf %19, %22 : vector<8x32xf32>
    %24 = vector.broadcast %1 : vector<1x32xf32> to vector<8x32xf32>
    %25 = arith.addf %23, %24 : vector<8x32xf32>
    %c0_11 = arith.constant 0 : index
    %c0_12 = arith.constant 0 : index
    %c0_13 = arith.constant 0 : index
    %26 = vector.load %arg5[%c0_11, %c0_12, %c0_13] : memref<4x8x32xf32, #tpu.memory_space<vmem>>, vector<1x8x32xf32>
    %27 = vector.shape_cast %26 : vector<1x8x32xf32> to vector<8x32xf32>
    %28 = vector.shape_cast %25 : vector<8x32xf32> to vector<1x8x32xf32>
    tpu.vector_store %arg5[%c0_11, %c0_12, %c0_13], %28 {strides = array<i32>} : memref<4x8x32xf32, #tpu.memory_space<vmem>>, vector<1x8x32xf32>,
    %c1_14 = arith.constant 1 : index
    %c0_15 = arith.constant 0 : index
    %29 = memref.load %arg4[%c1_14, %c0_15] : memref<4x4xf32, #tpu.memory_space<smem>>
    %30 = vector.broadcast %29 : f32 to vector<8x32xf32>
    %31 = arith.mulf %30, %5 : vector<8x32xf32>
    %c1_16 = arith.constant 1 : index
    %c1_17 = arith.constant 1 : index
    %32 = memref.load %arg4[%c1_16, %c1_17] : memref<4x4xf32, #tpu.memory_space<smem>>
    %33 = vector.broadcast %32 : f32 to vector<8x32xf32>
    %34 = arith.mulf %33, %6 : vector<8x32xf32>
    %35 = arith.addf %31, %34 : vector<8x32xf32>
    %c1_18 = arith.constant 1 : index
    %c2_19 = arith.constant 2 : index
    %36 = memref.load %arg4[%c1_18, %c2_19] : memref<4x4xf32, #tpu.memory_space<smem>>
    %37 = vector.broadcast %36 : f32 to vector<8x32xf32>
    %38 = arith.mulf %37, %7 : vector<8x32xf32>
    %39 = arith.addf %35, %38 : vector<8x32xf32>
    %c1_20 = arith.constant 1 : index
    %c3_21 = arith.constant 3 : index
    %40 = memref.load %arg4[%c1_20, %c3_21] : memref<4x4xf32, #tpu.memory_space<smem>>
    %41 = vector.broadcast %40 : f32 to vector<8x32xf32>
    %42 = arith.mulf %41, %8 : vector<8x32xf32>
    %43 = arith.addf %39, %42 : vector<8x32xf32>
    %44 = vector.broadcast %1 : vector<1x32xf32> to vector<8x32xf32>
    %45 = arith.addf %43, %44 : vector<8x32xf32>
    %c1_22 = arith.constant 1 : index
    %c0_23 = arith.constant 0 : index
    %c0_24 = arith.constant 0 : index
    %46 = vector.load %arg5[%c1_22, %c0_23, %c0_24] : memref<4x8x32xf32, #tpu.memory_space<vmem>>, vector<1x8x32xf32>
    %47 = vector.shape_cast %46 : vector<1x8x32xf32> to vector<8x32xf32>
    %48 = vector.shape_cast %45 : vector<8x32xf32> to vector<1x8x32xf32>
    tpu.vector_store %arg5[%c1_22, %c0_23, %c0_24], %48 {strides = array<i32>} : memref<4x8x32xf32, #tpu.memory_space<vmem>>, vector<1x8x32xf32>,
    %c2_25 = arith.constant 2 : index
    %c0_26 = arith.constant 0 : index
    %49 = memref.load %arg4[%c2_25, %c0_26] : memref<4x4xf32, #tpu.memory_space<smem>>
    %50 = vector.broadcast %49 : f32 to vector<8x32xf32>
    %51 = arith.mulf %50, %5 : vector<8x32xf32>
    %c2_27 = arith.constant 2 : index
    %c1_28 = arith.constant 1 : index
    %52 = memref.load %arg4[%c2_27, %c1_28] : memref<4x4xf32, #tpu.memory_space<smem>>
    %53 = vector.broadcast %52 : f32 to vector<8x32xf32>
    %54 = arith.mulf %53, %6 : vector<8x32xf32>
    %55 = arith.addf %51, %54 : vector<8x32xf32>
    %c2_29 = arith.constant 2 : index
    %c2_30 = arith.constant 2 : index
    %56 = memref.load %arg4[%c2_29, %c2_30] : memref<4x4xf32, #tpu.memory_space<smem>>
    %57 = vector.broadcast %56 : f32 to vector<8x32xf32>
    %58 = arith.mulf %57, %7 : vector<8x32xf32>
    %59 = arith.addf %55, %58 : vector<8x32xf32>
    %c2_31 = arith.constant 2 : index
    %c3_32 = arith.constant 3 : index
    %60 = memref.load %arg4[%c2_31, %c3_32] : memref<4x4xf32, #tpu.memory_space<smem>>
    %61 = vector.broadcast %60 : f32 to vector<8x32xf32>
    %62 = arith.mulf %61, %8 : vector<8x32xf32>
    %63 = arith.addf %59, %62 : vector<8x32xf32>
    %64 = vector.broadcast %1 : vector<1x32xf32> to vector<8x32xf32>
    %65 = arith.addf %63, %64 : vector<8x32xf32>
    %c2_33 = arith.constant 2 : index
    %c0_34 = arith.constant 0 : index
    %c0_35 = arith.constant 0 : index
    %66 = vector.load %arg5[%c2_33, %c0_34, %c0_35] : memref<4x8x32xf32, #tpu.memory_space<vmem>>, vector<1x8x32xf32>
    %67 = vector.shape_cast %66 : vector<1x8x32xf32> to vector<8x32xf32>
    %68 = vector.shape_cast %65 : vector<8x32xf32> to vector<1x8x32xf32>
    tpu.vector_store %arg5[%c2_33, %c0_34, %c0_35], %68 {strides = array<i32>} : memref<4x8x32xf32, #tpu.memory_space<vmem>>, vector<1x8x32xf32>,
    %c3_36 = arith.constant 3 : index
    %c0_37 = arith.constant 0 : index
    %69 = memref.load %arg4[%c3_36, %c0_37] : memref<4x4xf32, #tpu.memory_space<smem>>
    %70 = vector.broadcast %69 : f32 to vector<8x32xf32>
    %71 = arith.mulf %70, %5 : vector<8x32xf32>
    %c3_38 = arith.constant 3 : index
    %c1_39 = arith.constant 1 : index
    %72 = memref.load %arg4[%c3_38, %c1_39] : memref<4x4xf32, #tpu.memory_space<smem>>
    %73 = vector.broadcast %72 : f32 to vector<8x32xf32>
    %74 = arith.mulf %73, %6 : vector<8x32xf32>
    %75 = arith.addf %71, %74 : vector<8x32xf32>
    %c3_40 = arith.constant 3 : index
    %c2_41 = arith.constant 2 : index
    %76 = memref.load %arg4[%c3_40, %c2_41] : memref<4x4xf32, #tpu.memory_space<smem>>
    %77 = vector.broadcast %76 : f32 to vector<8x32xf32>
    %78 = arith.mulf %77, %7 : vector<8x32xf32>
    %79 = arith.addf %75, %78 : vector<8x32xf32>
    %c3_42 = arith.constant 3 : index
    %c3_43 = arith.constant 3 : index
    %80 = memref.load %arg4[%c3_42, %c3_43] : memref<4x4xf32, #tpu.memory_space<smem>>
    %81 = vector.broadcast %80 : f32 to vector<8x32xf32>
    %82 = arith.mulf %81, %8 : vector<8x32xf32>
    %83 = arith.addf %79, %82 : vector<8x32xf32>
    %84 = vector.broadcast %1 : vector<1x32xf32> to vector<8x32xf32>
    %85 = arith.addf %83, %84 : vector<8x32xf32>
    %c3_44 = arith.constant 3 : index
    %c0_45 = arith.constant 0 : index
    %c0_46 = arith.constant 0 : index
    %86 = vector.load %arg5[%c3_44, %c0_45, %c0_46] : memref<4x8x32xf32, #tpu.memory_space<vmem>>, vector<1x8x32xf32>
    %87 = vector.shape_cast %86 : vector<1x8x32xf32> to vector<8x32xf32>
    %88 = vector.shape_cast %85 : vector<8x32xf32> to vector<1x8x32xf32>
    tpu.vector_store %arg5[%c3_44, %c0_45, %c0_46], %88 {strides = array<i32>} : memref<4x8x32xf32, #tpu.memory_space<vmem>>, vector<1x8x32xf32>,
    return
  }
  func.func @transform_0(%arg0: i32) -> (i32, i32, i32) {
    %c0_i32 = arith.constant 0 : i32
    %c0_i32_0 = arith.constant 0 : i32
    %c0_i32_1 = arith.constant 0 : i32
    return %c0_i32, %arg0, %c0_i32_0 : i32, i32, i32
  }
  func.func @transform_1(%arg0: i32) -> (i32, i32) {
    %c0_i32 = arith.constant 0 : i32
    %c0_i32_0 = arith.constant 0 : i32
    %c0_i32_1 = arith.constant 0 : i32
    return %c0_i32, %c0_i32_0 : i32, i32
  }
  func.func @transform_2(%arg0: i32) -> (i32, i32) {
    %c0_i32 = arith.constant 0 : i32
    %c0_i32_0 = arith.constant 0 : i32
    %c0_i32_1 = arith.constant 0 : i32
    return %c0_i32, %c0_i32_0 : i32, i32
  }
  func.func @transform_3(%arg0: i32) -> (i32, i32) {
    %c0_i32 = arith.constant 0 : i32
    %c0_i32_0 = arith.constant 0 : i32
    %c0_i32_1 = arith.constant 0 : i32
    return %c0_i32, %c0_i32_0 : i32, i32
  }
  func.func @transform_4(%arg0: i32) -> (i32, i32, i32) {
    %c0_i32 = arith.constant 0 : i32
    %c0_i32_0 = arith.constant 0 : i32
    %c0_i32_1 = arith.constant 0 : i32
    return %c0_i32, %arg0, %c0_i32_0 : i32, i32, i32
  }
}

</mosaic_0001>

<llo_original>
// kernel: agent_graph_conv.1
$region0: #{agent_graph_conv.1}
  #allocation0 [shape = 'u32[]', space=smem, size = 0x4, offset = 0x4, fixed_abs, tag = 'smem constant byte address 0x4 - core index']
  #allocation1 [shape = 'u32[72,128]{1,0:T(1,128)}', space=vmem, size = 0x9000, scoped, tag = 'internal scratch']
  %s0 = inlined_call_operand.vmem [shape: f32[4,16,32], index: 0, kind: input, shape index: {}]
  %s1 = inlined_call_operand.vmem [shape: f32[32,32], index: 1, kind: input, shape index: {}]
  %s2 = inlined_call_operand.vmem [shape: f32[1,32], index: 2, kind: input, shape index: {}]
  %s3 = inlined_call_operand.vmem [shape: f32[4,4], index: 3, kind: input, shape index: {}]
  %s4 = inlined_call_operand.hbm [shape: f32[4,16,32], index: 4, kind: output, shape index: {}]
  %s5 = sld [smem:[#allocation0]]
  $region91: #{agent_graph_conv.1} parent=0
    _
  %s7 = ssub.s32 1, %s5
  %s8 = scalar_select 0, %s7, %s5
  $region1: #{agent_graph_conv.1} parent=0
    #allocation2 [shape = 'u8[32768]{0}', space=vmem, size = 0x8000, scoped, tag = 'input window, operand 0']
    #allocation3 [shape = 'u8[2048]{0}', space=smem, size = 0x800, scoped, tag = 'input window, operand 3, single buffered']
    #allocation4 [shape = 's32[2]{0}', space=sflag, size = 0x8, scoped, tag = 'scoped memory for agent_graph_conv.1']
    #allocation5 [shape = 's32[2]{0}', space=sflag, size = 0x8, scoped, tag = 'scoped memory for agent_graph_conv.1']
    #allocation6 [shape = 'u8[32768]{0}', space=vmem, size = 0x8000, scoped, tag = 'output window, operand 0']
    %9 = vsyncpa [#allocation5], 0
    %10 = vsyncpa [#allocation4], 0
    %s11 = scalar_lea.sflag [#allocation4], 1
    %12 = vsyncpa %s11, 0
    loop: start=0, step=1, limit=4
    $region2: #{agent_graph_conv.1} parent=1 // loop_pre_header
      _
    $region3: #{agent_graph_conv.1} parent=1 // loop_header
      %s14 = sphi 0, %s18
      %p15 = scmp.ge.s32.totalorder %s14, 4
      %s24 = sphi 0, %s26
      %s27 = sphi 0, %s24
      %s28 = sphi 0, %s27
      %s44 = sphi 0, %s28
      %s48 = sphi 0, %s48
      %s50 = sphi 0, %s48
      %s51 = sphi 0, %s50
      %s65 = sphi 0, %s51
      %s69 = sphi 0, %s69
      %s71 = sphi 0, %s69
      %s72 = sphi 0, %s71
      %s86 = sphi 0, %s72
      %s90 = sphi 0, %s90
      %s92 = sphi 0, %s90
      %s93 = sphi 0, %s92
      %s107 = sphi 0, %s93
      %s113 = sphi 0, %s115
      %s116 = sphi 0, %s113
      %s117 = sphi 0, %s116
      %s133 = sphi 0, %s117
    $region4: #{agent_graph_conv.1} parent=1 // loop_header_branch
      %17 = sbr.rel (%p15) target = $region8
    $region5: #{agent_graph_conv.1} parent=1 // loop_body
      %s19 = ssub.s32 %s14, 1
      %s20 = ssub.s32 %s14, 2
      %s21 = sadd.s32 %s14, 1
      %s22 = ssub.s32 %s14, %s21
      %p23 = scmp.eq.s32.totalorder %s22, 0
      %s25 = sadd.s32 %s24, 1
      %s26 = scalar_select %p23, %s24, %s25
      %p29 = pneg %p23
      %p30 = scmp.eq.s32.totalorder %s14, 1
      %p31 = por %p29, %p30
      %p32 = scmp.ne.s32.totalorder %s24, %s27
      %p33 = scmp.eq.s32.totalorder %s14, 0
      %p34 = por %p32, %p33
      %p35 = scmp.ne.s32.totalorder %s24, %s27
      %p36 = scmp.eq.s32.totalorder %s19, 1
      %p37 = por %p35, %p36
      %p38 = scmp.ne.s32.totalorder %s27, %s28
      %p39 = scmp.eq.s32.totalorder %s19, 0
      %p40 = por %p38, %p39
      %p41 = scmp.ne.s32.totalorder %s27, %s28
      %p42 = scmp.eq.s32.totalorder %s20, 1
      %p43 = por %p41, %p42
      %p45 = scmp.ne.s32.totalorder %s28, %s44
      %p46 = scmp.eq.s32.totalorder %s20, 0
      %p47 = por %p45, %p46
      %s49 = sadd.s32 %s48, 1
      %p52 = scmp.eq.s32.totalorder %s14, 1
      %p53 = scmp.ne.s32.totalorder %s48, %s50
      %p54 = scmp.eq.s32.totalorder %s14, 0
      %p55 = por %p53, %p54
      %p56 = scmp.ne.s32.totalorder %s48, %s50
      %p57 = scmp.eq.s32.totalorder %s19, 1
      %p58 = por %p56, %p57
      %p59 = scmp.ne.s32.totalorder %s50, %s51
      %p60 = scmp.eq.s32.totalorder %s19, 0
      %p61 = por %p59, %p60
      %p62 = scmp.ne.s32.totalorder %s50, %s51
      %p63 = scmp.eq.s32.totalorder %s20, 1
      %p64 = por %p62, %p63
      %p66 = scmp.ne.s32.totalorder %s51, %s65
      %p67 = scmp.eq.s32.totalorder %s20, 0
      %p68 = por %p66, %p67
      %s70 = sadd.s32 %s69, 1
      %p73 = scmp.eq.s32.totalorder %s14, 1
      %p74 = scmp.ne.s32.totalorder %s69, %s71
      %p75 = scmp.eq.s32.totalorder %s14, 0
      %p76 = por %p74, %p75
      %p77 = scmp.ne.s32.totalorder %s69, %s71
      %p78 = scmp.eq.s32.totalorder %s19, 1
      %p79 = por %p77, %p78
      %p80 = scmp.ne.s32.totalorder %s71, %s72
      %p81 = scmp.eq.s32.totalorder %s19, 0
      %p82 = por %p80, %p81
      %p83 = scmp.ne.s32.totalorder %s71, %s72
      %p84 = scmp.eq.s32.totalorder %s20, 1
      %p85 = por %p83, %p84
      %p87 = scmp.ne.s32.totalorder %s72, %s86
      %p88 = scmp.eq.s32.totalorder %s20, 0
      %p89 = por %p87, %p88
      %s91 = sadd.s32 %s90, 1
      %p94 = scmp.eq.s32.totalorder %s14, 1
      %p95 = scmp.ne.s32.totalorder %s90, %s92
      %p96 = scmp.eq.s32.totalorder %s14, 0
      %p97 = por %p95, %p96
      %p98 = scmp.ne.s32.totalorder %s90, %s92
      %p99 = scmp.eq.s32.totalorder %s19, 1
      %p100 = por %p98, %p99
      %p101 = scmp.ne.s32.totalorder %s92, %s93
      %p102 = scmp.eq.s32.totalorder %s19, 0
      %p103 = por %p101, %p102
      %p104 = scmp.ne.s32.totalorder %s92, %s93
      %p105 = scmp.eq.s32.totalorder %s20, 1
      %p106 = por %p104, %p105
      %p108 = scmp.ne.s32.totalorder %s93, %s107
      %p109 = scmp.eq.s32.totalorder %s20, 0
      %p110 = por %p108, %p109
      %s111 = ssub.s32 %s14, %s21
      %p112 = scmp.eq.s32.totalorder %s111, 0
      %s114 = sadd.s32 %s113, 1
      %s115 = scalar_select %p112, %s113, %s114
      %p118 = pneg %p112
      %p119 = scmp.eq.s32.totalorder %s14, 1
      %p120 = por %p118, %p119
      %p121 = scmp.ne.s32.totalorder %s113, %s116
      %p122 = scmp.eq.s32.totalorder %s14, 0
      %p123 = por %p121, %p122
      %p124 = scmp.ne.s32.totalorder %s113, %s116
      %p125 = scmp.eq.s32.totalorder %s19, 1
      %p126 = por %p124, %p125
      %p127 = scmp.ne.s32.totalorder %s116, %s117
      %p128 = scmp.eq.s32.totalorder %s19, 0
      %p129 = por %p127, %p128
      %p130 = scmp.ne.s32.totalorder %s116, %s117
      %p131 = scmp.eq.s32.totalorder %s20, 1
      %p132 = por %p130, %p131
      %p134 = scmp.ne.s32.totalorder %s117, %s133
      %p135 = scmp.eq.s32.totalorder %s20, 0
      %p136 = por %p134, %p135
      %p137 = scmp.le.s32.totalorder 1, %s14
      %p138 = scmp.lt.s32.totalorder %s14, 3
      %p139 = pnand %p137, %p138
      %p140 = pneg %p139
      // Predicated region
      $region9: #{agent_graph_conv.1} parent=5 // pred_check
        _
      $region10: #{agent_graph_conv.1} parent=5 // pred_check_branch
        %142 = sbr.rel (%p139) target = $region12
      $region11: #{agent_graph_conv.1} parent=5 // pred_region
        %s143 = ssub.s32 %s14, 1
        // Predicated region
        $region13: #{agent_graph_conv.1} parent=11 // pred_check
          %p144 = pneg %p61
        $region14: #{agent_graph_conv.1} parent=11 // pred_check_branch
          %146 = sbr.rel (%p144) target = $region16
        $region15: #{agent_graph_conv.1} parent=11 // pred_region
          _
        $region16: #{agent_graph_conv.1} parent=11 // pred_fallthru
          _
        // Predicated region
        $region17: #{agent_graph_conv.1} parent=11 // pred_check
          %p147 = pneg %p82
        $region18: #{agent_graph_conv.1} parent=11 // pred_check_branch
          %149 = sbr.rel (%p147) target = $region20
        $region19: #{agent_graph_conv.1} parent=11 // pred_region
          _
        $region20: #{agent_graph_conv.1} parent=11 // pred_fallthru
          _
        // Predicated region
        $region21: #{agent_graph_conv.1} parent=11 // pred_check
          %p150 = pneg %p103
        $region22: #{agent_graph_conv.1} parent=11 // pred_check_branch
          %152 = sbr.rel (%p150) target = $region24
        $region23: #{agent_graph_conv.1} parent=11 // pred_region
          %154 = vsyncadd [#allocation5], 0
          %s156 = sshll.u32 %s3, 4
          %s157 = int_to_ptr.vmem [resolvable:$true] %s156
          %159 = dma.vmem_to_smem %s157, 64, [#allocation3], [#allocation5]
        $region24: #{agent_graph_conv.1} parent=11 // pred_fallthru
          _
      $region12: #{agent_graph_conv.1} parent=5 // pred_fallthru
        _
      %p160 = scmp.lt.s32.totalorder %s14, 2
      // Predicated region
      $region25: #{agent_graph_conv.1} parent=5 // pred_check
        %p161 = pneg %p160
      $region26: #{agent_graph_conv.1} parent=5 // pred_check_branch
        %163 = sbr.rel (%p161) target = $region28
      $region27: #{agent_graph_conv.1} parent=5 // pred_region
        // Predicated region
        $region29: #{agent_graph_conv.1} parent=27 // pred_check
          %p164 = pneg %p34
        $region30: #{agent_graph_conv.1} parent=27 // pred_check_branch
          %166 = sbr.rel (%p164) target = $region32
        $region31: #{agent_graph_conv.1} parent=27 // pred_region
          %s167 = sand.u32 %s24, 1
          %s168 = sand.u32 %s24, 1
          %s169 = smul.addr %s168, 32
          %s170 = scalar_lea.vmem [#allocation2], %s169
          %s171 = smul.addr %s14, 8
          %s172 = scalar_lea.vmem %s0, %s171
          // Predicated region
          $region33: #{agent_graph_conv.1} parent=31 // pred_check
            _
          $region34: #{agent_graph_conv.1} parent=31 // pred_check_branch
            %174 = sbr.rel (0) target = $region36
          $region35: #{agent_graph_conv.1} parent=31 // pred_region
            // Predicated region
            $region37: #{agent_graph_conv.1} parent=35 // pred_check
              _
            $region38: #{agent_graph_conv.1} parent=35 // pred_check_branch
              %176 = sbr.rel (0) target = $region40
            $region39: #{agent_graph_conv.1} parent=35 // pred_region
              // Predicated region
              $region52: #{agent_graph_conv.1} parent=39 // pred_check
                _
              $region53: #{agent_graph_conv.1} parent=39 // pred_check_branch
                %198 = sbr.rel (0) target = $region55
              $region54: #{agent_graph_conv.1} parent=39 // pred_region
                loop: start=0, step=1, limit=1
                $region56: #{agent_graph_conv.1} parent=54 // loop_pre_header
                  _
                $region57: #{agent_graph_conv.1} parent=54 // loop_header
                  %s200 = sphi 0, %s204
                  %p201 = scmp.ge.s32.totalorder %s200, 1
                  %s205 = sphi %s172, %s172
                  %s206 = sphi %s170, %s170
                $region58: #{agent_graph_conv.1} parent=54 // loop_header_branch
                  %203 = sbr.rel (%p201) target = $region62
                $region59: #{agent_graph_conv.1} parent=54 // loop_body
                  %v207 = vld [vmem:[%s205] sm:$0xff]
                  %208 = vst [vmem:[%s206] sm:$0xff] %v207
                  %v209 = vld [vmem:[%s205 + $0x10] sm:$0xff]
                  %210 = vst [vmem:[%s206 + $0x8] sm:$0xff] %v209
                  %v211 = vld [vmem:[%s205 + $0x20] sm:$0xff]
                  %212 = vst [vmem:[%s206 + $0x10] sm:$0xff] %v211
                  %v213 = vld [vmem:[%s205 + $0x30] sm:$0xff]
                  %214 = vst [vmem:[%s206 + $0x18] sm:$0xff] %v213
                $region60: #{agent_graph_conv.1} parent=54 // loop_footer
                  %s204 = sadd.s32 1, %s200
                $region61: #{agent_graph_conv.1} parent=54 // loop_footer_branch
                  %199 = sbr.rel target = $region57
                $region62: #{agent_graph_conv.1} parent=54 // loop_exit
                  _
              $region55: #{agent_graph_conv.1} parent=39 // pred_fallthru
                _
              // Predicated region
              $region63: #{agent_graph_conv.1} parent=39 // pred_check
                _
              $region64: #{agent_graph_conv.1} parent=39 // pred_check_branch
                %216 = sbr.rel target = $region66
              $region65: #{agent_graph_conv.1} parent=39 // pred_region
                _
              $region66: #{agent_graph_conv.1} parent=39 // pred_fallthru
                _
            $region40: #{agent_graph_conv.1} parent=35 // pred_fallthru
              _
            // Predicated region
            $region41: #{agent_graph_conv.1} parent=35 // pred_check
              _
            $region42: #{agent_graph_conv.1} parent=35 // pred_check_branch
              %178 = sbr.rel target = $region44
            $region43: #{agent_graph_conv.1} parent=35 // pred_region
              %s180 = ssub.s32 256, 1
              loop: start=0, step=1, limit=1
              $region45: #{agent_graph_conv.1} parent=43 // loop_pre_header
                _
              $region46: #{agent_graph_conv.1} parent=43 // loop_header
                %s182 = sphi 0, %s186
                %p183 = scmp.ge.s32.totalorder %s182, 1
                %s187 = sphi %s172, %s172
                %s188 = sphi %s170, %s170
              $region47: #{agent_graph_conv.1} parent=43 // loop_header_branch
                %185 = sbr.rel (%p183) target = $region51
              $region48: #{agent_graph_conv.1} parent=43 // loop_body
                %v189 = vld [vmem:[%s187] sm:%s180]
                %190 = vst [vmem:[%s188] sm:%s180] %v189
                %v191 = vld [vmem:[%s187 + $0x10] sm:%s180]
                %192 = vst [vmem:[%s188 + $0x8] sm:%s180] %v191
                %v193 = vld [vmem:[%s187 + $0x20] sm:%s180]
                %194 = vst [vmem:[%s188 + $0x10] sm:%s180] %v193
                %v195 = vld [vmem:[%s187 + $0x30] sm:%s180]
                %196 = vst [vmem:[%s188 + $0x18] sm:%s180] %v195
              $region49: #{agent_graph_conv.1} parent=43 // loop_footer
                %s186 = sadd.s32 1, %s182
              $region50: #{agent_graph_conv.1} parent=43 // loop_footer_branch
                %181 = sbr.rel target = $region46
              $region51: #{agent_graph_conv.1} parent=43 // loop_exit
                _
            $region44: #{agent_graph_conv.1} parent=35 // pred_fallthru
              _
          $region36: #{agent_graph_conv.1} parent=31 // pred_fallthru
            _
          %217 = vnop
        $region32: #{agent_graph_conv.1} parent=27 // pred_fallthru
          _
      $region28: #{agent_graph_conv.1} parent=5 // pred_fallthru
        _
      %p218 = scmp.le.s32.totalorder 1, %s14
      %p219 = scmp.lt.s32.totalorder %s14, 3
      %p220 = pnand %p218, %p219
      %p221 = pneg %p220
      // Predicated region
      $region67: #{agent_graph_conv.1} parent=5 // pred_check
        _
      $region68: #{agent_graph_conv.1} parent=5 // pred_check_branch
        %223 = sbr.rel (%p220) target = $region70
      $region69: #{agent_graph_conv.1} parent=5 // pred_region
        %s224 = ssub.s32 %s14, 1
        %s225 = sand.u32 %s27, 1
        %s226 = sand.u32 %s27, 1
        %s227 = smul.addr %s226, 32
        %s228 = scalar_lea.vmem [#allocation2], %s227
        // Predicated region
        $region71: #{agent_graph_conv.1} parent=69 // pred_check
          %p229 = pneg %p40
        $region72: #{agent_graph_conv.1} parent=69 // pred_check_branch
          %231 = sbr.rel (%p229) target = $region74
        $region73: #{agent_graph_conv.1} parent=69 // pred_region
          _
        $region74: #{agent_graph_conv.1} parent=69 // pred_fallthru
          _
        // Predicated region
        $region75: #{agent_graph_conv.1} parent=69 // pred_check
          %p232 = pneg %p103
        $region76: #{agent_graph_conv.1} parent=69 // pred_check_branch
          %234 = sbr.rel (%p232) target = $region78
        $region77: #{agent_graph_conv.1} parent=69 // pred_region
          %236 = dma.done [#allocation5], 64
        $region78: #{agent_graph_conv.1} parent=69 // pred_fallthru
          _
        %237 = sfence
        %s238 = sand.u32 %s27, 1
        %s239 = sand.u32 %s27, 1
        %s240 = smul.addr %s239, 32
        %s241 = scalar_lea.vmem [#allocation2], %s240
        %p242 = pneg %p40
        %p243 = pneg %p37
        %p244 = pneg %p61
        %p245 = pneg %p58
        %p246 = pneg %p82
        %p247 = pneg %p79
        %p248 = pneg %p103
        %p249 = pneg %p100
        %p250 = pneg %p129
        %p251 = pneg %p126
        %s252 = sand.u32 %s116, 1
        %s253 = scalar_lea.sflag [#allocation4], %s252
        %s254 = sand.u32 %s116, 1
        %s255 = smul.addr %s254, 32
        %s256 = scalar_lea.vmem [#allocation6], %s255
        %v257 = vld [vmem:[%s1] sm:$0xff]
        %v258 = vld [vmem:[%s1 + $0x8] sm:$0xff]
        %v259 = vld [vmem:[%s1 + $0x10] sm:$0xff]
        %v260 = vld [vmem:[%s1 + $0x18] sm:$0xff]
        %v261 = vld [vmem:[%s2] sm:$0x1]
        %v262 = vld [vmem:[%s228] sm:$0xff]
        %v263 = vld [vmem:[%s228 + $0x8] sm:$0xff]
        %v264 = vld [vmem:[%s228 + $0x10] sm:$0xff]
        %v265 = vld [vmem:[%s228 + $0x18] sm:$0xff]
        %vm266 = vcmask 261120
        %v268 = vsel %vm266, %v262, 0
        %v271 = vsel %vm266, %v263, 0
        %v274 = vsel %vm266, %v264, 0
        %v277 = vsel %vm266, %v265, 0
        %279 = vmatpush.msra.mxu0 0.0
        %280 = vmatpush.msra.mxu0 0.0
        %281 = vmatpush.msra.mxu0 0.0
        %282 = vmatpush.msra.mxu0 0.0
        %283 = vmatpush.msra.mxu0 0.0
        %284 = vmatpush.msra.mxu0 0.0
        %285 = vmatpush.msra.mxu0 0.0
        %286 = vmatpush.msra.mxu0 0.0
        %287 = vmatpush.msra.mxu0 0.0
        %288 = vmatpush.msra.mxu0 0.0
        %289 = vmatpush.msra.mxu0 0.0
        %290 = vmatpush.msra.mxu0 0.0
        %291 = vmatpush.msra.mxu0 %v260
        %292 = vmatpush.msra.mxu0 %v259
        %293 = vmatpush.msra.mxu0 %v258
        %294 = vmatpush.msra.mxu0 %v257
        %295 = vmatmul.f32.gmra.mxu0 %v268
        %v296 = vpop.f32.mrf.mxu0
        %v297 = vadd.f32 0.0, %v296
        %298 = vmatmul.f32.gmra.mxu0 %v271
        %v299 = vpop.f32.mrf.mxu0
        %v300 = vadd.f32 0.0, %v299
        %301 = vmatmul.f32.gmra.mxu0 %v274
        %v302 = vpop.f32.mrf.mxu0
        %v303 = vadd.f32 0.0, %v302
        %304 = vmatmul.f32.gmra.mxu0 %v277
        %v305 = vpop.f32.mrf.mxu0
        %v306 = vadd.f32 0.0, %v305
        %307 = vdwg.mxu0
        %s308 = sld [smem:[#allocation3]]
        %v309 = vstv %s308
        %v310 = vmul.f32 %v309, %v297
        %s311 = sld [smem:[#allocation3 + $0x1]]
        %v312 = vstv %s311
        %v313 = vmul.f32 %v312, %v300
        %v314 = vadd.f32 %v310, %v313
        %s315 = sld [smem:[#allocation3 + $0x2]]
        %v316 = vstv %s315
        %v317 = vmul.f32 %v316, %v303
        %v318 = vadd.f32 %v314, %v317
        %s319 = sld [smem:[#allocation3 + $0x3]]
        %v320 = vstv %s319
        %v321 = vmul.f32 %v320, %v306
        %v322 = vadd.f32 %v318, %v321
        %v324 = vperm.slane %v261, 0
        %v326 = vadd.f32 %v322, %v324
        %327 = vst.msk [vmem:[%s256] sm:$0xff] %vm266, %v326
        %s328 = sld [smem:[#allocation3 + $0x80]]
        %v329 = vstv %s328
        %v330 = vmul.f32 %v329, %v297
        %s331 = sld [smem:[#allocation3 + $0x81]]
        %v332 = vstv %s331
        %v333 = vmul.f32 %v332, %v300
        %v334 = vadd.f32 %v330, %v333
        %s335 = sld [smem:[#allocation3 + $0x82]]
        %v336 = vstv %s335
        %v337 = vmul.f32 %v336, %v303
        %v338 = vadd.f32 %v334, %v337
        %s339 = sld [smem:[#allocation3 + $0x83]]
        %v340 = vstv %s339
        %v341 = vmul.f32 %v340, %v306
        %v342 = vadd.f32 %v338, %v341
        %v343 = vadd.f32 %v342, %v324
        %s344 = scalar_lea.vmem %s256, 8 [#allocation6]
        %345 = vst.msk [vmem:[%s344] sm:$0xff] %vm266, %v343
        %s346 = sld [smem:[#allocation3 + $0x100]]
        %v347 = vstv %s346
        %v348 = vmul.f32 %v347, %v297
        %s349 = sld [smem:[#allocation3 + $0x101]]
        %v350 = vstv %s349
        %v351 = vmul.f32 %v350, %v300
        %v352 = vadd.f32 %v348, %v351
        %s353 = sld [smem:[#allocation3 + $0x102]]
        %v354 = vstv %s353
        %v355 = vmul.f32 %v354, %v303
        %v356 = vadd.f32 %v352, %v355
        %s357 = sld [smem:[#allocation3 + $0x103]]
        %v358 = vstv %s357
        %v359 = vmul.f32 %v358, %v306
        %v360 = vadd.f32 %v356, %v359
        %v361 = vadd.f32 %v360, %v324
        %s362 = scalar_lea.vmem %s256, 16 [#allocation6]
        %363 = vst.msk [vmem:[%s362] sm:$0xff] %vm266, %v361
        %s364 = sld [smem:[#allocation3 + $0x180]]
        %v365 = vstv %s364
        %v366 = vmul.f32 %v365, %v297
        %s367 = sld [smem:[#allocation3 + $0x181]]
        %v368 = vstv %s367
        %v369 = vmul.f32 %v368, %v300
        %v370 = vadd.f32 %v366, %v369
        %s371 = sld [smem:[#allocation3 + $0x182]]
        %v372 = vstv %s371
        %v373 = vmul.f32 %v372, %v303
        %v374 = vadd.f32 %v370, %v373
        %s375 = sld [smem:[#allocation3 + $0x183]]
        %v376 = vstv %s375
        %v377 = vmul.f32 %v376, %v306
        %v378 = vadd.f32 %v374, %v377
        %v379 = vadd.f32 %v378, %v324
        %s380 = scalar_lea.vmem %s256, 24 [#allocation6]
        %381 = vst.msk [vmem:[%s380] sm:$0xff] %vm266, %v379
        %s382 = sand.u32 %s116, 1
        %s383 = scalar_lea.sflag [#allocation4], %s382
        %s384 = sand.u32 %s116, 1
        %s385 = smul.addr %s384, 32
        %s386 = scalar_lea.vmem [#allocation6], %s385
        // Predicated region
        $region79: #{agent_graph_conv.1} parent=69 // pred_check
          %p387 = pneg %p126
        $region80: #{agent_graph_conv.1} parent=69 // pred_check_branch
          %389 = sbr.rel (%p387) target = $region82
        $region81: #{agent_graph_conv.1} parent=69 // pred_region
          %391 = vsyncadd %s383, 0
          %s392 = smul.addr %s19, 8
          %s393 = scalar_lea.hbm %s4, %s392
          %s394 = sshll.u32 %s386, 4
          %s395 = int_to_ptr.vmem [resolvable:$true] %s394
          %s396 = sshll.u32 %s393, 4
          %s397 = int_to_ptr.hbm [resolvable:$true] %s396
          %402 = dma.vmem_to_hbm [thread:$0]  %s395, 512, %s397, %s383, 128, 256, 8
        $region82: #{agent_graph_conv.1} parent=69 // pred_fallthru
          _
      $region70: #{agent_graph_conv.1} parent=5 // pred_fallthru
        _
      %p403 = scmp.le.s32.totalorder 2, %s14
      // Predicated region
      $region83: #{agent_graph_conv.1} parent=5 // pred_check
        %p404 = pneg %p403
      $region84: #{agent_graph_conv.1} parent=5 // pred_check_branch
        %406 = sbr.rel (%p404) target = $region86
      $region85: #{agent_graph_conv.1} parent=5 // pred_region
        %s407 = ssub.s32 %s14, 2
        // Predicated region
        $region87: #{agent_graph_conv.1} parent=85 // pred_check
          %p408 = pneg %p132
        $region88: #{agent_graph_conv.1} parent=85 // pred_check_branch
          %410 = sbr.rel (%p408) target = $region90
        $region89: #{agent_graph_conv.1} parent=85 // pred_region
          %s411 = sand.u32 %s117, 1
          %s412 = scalar_lea.sflag [#allocation4], %s411
          %s413 = sand.u32 %s117, 1
          %s414 = smul.addr %s413, 32
          %s415 = scalar_lea.vmem [#allocation6], %s414
          %417 = dma.done %s412, 512
        $region90: #{agent_graph_conv.1} parent=85 // pred_fallthru
          _
      $region86: #{agent_graph_conv.1} parent=5 // pred_fallthru
        _
    $region6: #{agent_graph_conv.1} parent=1 // loop_footer
      %s18 = sadd.s32 1, %s14
    $region7: #{agent_graph_conv.1} parent=1 // loop_footer_branch
      %13 = sbr.rel target = $region3
    $region8: #{agent_graph_conv.1} parent=1 // loop_exit
      _
    %418 = vsyncpa [#allocation4], 1
    %s419 = scalar_lea.sflag [#allocation4], 1
    %420 = vsyncpa %s419, 1
    %421 = vsyncpa [#allocation5], 1
    %s422 = scalar_lea.sflag [#allocation5], 1
    %423 = vsyncpa %s422, 1

</llo_original>
